<compile_context>
chip_gen: v7x
topology: tpu7x:2x2x1
jax: 0.10.0
libtpu: 0.0.40
codegen_flags: <defaults>
</compile_context>

<pallas_src>
import jax
import jax.numpy as jnp
from jax import lax
from jax.experimental import pallas as pl
from jax.experimental.pallas import tpu as pltpu

LANE = 128


def _chip_config():
    """Returns (num_cores, dimension_semantics, target_block_rows, vmem_limit_bytes)."""
    try:
        kind = jax.devices()[0].device_kind.lower()
    except Exception:
        kind = ""
    if "v7" in kind:
        # 2 TensorCores per chip: make the core split real with CORE_PARALLEL.
        core_sem = getattr(pltpu, "CORE_PARALLEL", "parallel")
        arb = getattr(pltpu, "ARBITRARY", "arbitrary")
        return 2, (core_sem, arb), 4096, 48 * 1024 * 1024
    # Single-TensorCore chips (v5e / v6e / others): no core axis overhead,
    # moderate tiles that comfortably fit scoped VMEM with the f32 temporaries.
    return 1, ("arbitrary", "arbitrary"), 2048, 32 * 1024 * 1024


def _make_kernel(rows, block_rows, steps_per_core, mask_from, need_mask):
    fold8 = (block_rows % 8 == 0)

    def kernel(pred_ref, gt_ref, loss_out_ref, npos_out_ref,
               loss_acc_ref, npos_acc_ref):
        c = pl.program_id(0)       # core split (only >1 on v7x)
        step = pl.program_id(1)    # reduction steps (arbitrary)
        gblock = c * steps_per_core + step

        @pl.when(step == 0)
        def _init():
            loss_acc_ref[...] = jnp.zeros_like(loss_acc_ref)
            npos_acc_ref[...] = jnp.zeros_like(npos_acc_ref)

        def accumulate(masked):
            pred = pred_ref[...].astype(jnp.float32)
            gt = gt_ref[...].astype(jnp.float32)

            pos_mask = gt == 1.0
            neg_mask = gt < 1.0
            if masked:
                row_ids = (lax.broadcasted_iota(jnp.int32, (block_rows, LANE), 0)
                           + gblock * block_rows)
                valid = row_ids < rows
                pos_mask = jnp.logical_and(valid, pos_mask)
                neg_mask = jnp.logical_and(valid, neg_mask)

            # Hand-expanded powers: **2 / **4 stay VPU multiplies; only the two
            # logs hit the EUP.
            omp = 1.0 - pred
            w = 1.0 - gt
            w2 = w * w
            pos_term = jnp.log(pred) * (omp * omp)
            neg_term = jnp.log(omp) * (pred * pred) * (w2 * w2)

            # Single nested select chain; where() blocks NaN from stale/garbage
            # rows and keeps gt > 1 contributing zero, matching the reference.
            loss_elem = jnp.where(pos_mask, pos_term,
                                  jnp.where(neg_mask, neg_term, 0.0))
            pos_cnt = pos_mask.astype(jnp.float32)

            if fold8:
                # In-step sublane fold to one (8, 128) vreg: layout-trivial
                # reshape + leading-axis sum = pure VPU adds, no acc RMW traffic.
                loss_acc_ref[...] += jnp.sum(
                    loss_elem.reshape(block_rows // 8, 8, LANE), axis=0)
                npos_acc_ref[...] += jnp.sum(
                    pos_cnt.reshape(block_rows // 8, 8, LANE), axis=0)
            else:
                # Tiny-array corner case (rows < sublane multiple): one-off
                # cross-sublane reduce into the first accumulator row.
                loss_acc_ref[0:1, :] += jnp.sum(loss_elem, axis=0, keepdims=True)
                npos_acc_ref[0:1, :] += jnp.sum(pos_cnt, axis=0, keepdims=True)

        if not need_mask:
            accumulate(False)
        else:
            @pl.when(gblock < mask_from)
            def _interior():
                accumulate(False)       # unmasked fast path

            @pl.when(gblock >= mask_from)
            def _boundary():
                accumulate(True)        # partial / redundant blocks only

        @pl.when(step == steps_per_core - 1)
        def _finalize():
            loss_out_ref[...] = loss_acc_ref[...]
            npos_out_ref[...] = npos_acc_ref[...]

    return kernel


def focal_loss(pred, gt):
    """Pallas implementation of FocalLoss.forward(out, target).

    pred, gt: arrays of shape (batch, c, h, w); pred values in (0, 1).
    Returns a float32 scalar.
    """
    assert pred.shape == gt.shape
    n = int(pred.size)

    num_cores, dim_sem, target_rows, vmem_limit = _chip_config()

    n_main = (n // LANE) * LANE
    loss_sum = jnp.float32(0.0)
    num_pos = jnp.float32(0.0)

    if n_main > 0:
        rows = n_main // LANE
        if n_main == n:
            pred2d = pred.reshape(rows, LANE)                    # free bitcast
            gt2d = gt.reshape(rows, LANE)
        else:
            # TODO(synk): ragged n % 128 != 0 pays a prefix-slice HBM copy
            # unless XLA fuses it (allow_input_fusion requested below).
            pred2d = pred.reshape(-1)[:n_main].reshape(rows, LANE)
            gt2d = gt.reshape(-1)[:n_main].reshape(rows, LANE)

        # Native sublane tiling multiple: 8 (f32), 16 (bf16), 32 (int8/fp8).
        mult = max(8, 32 // pred.dtype.itemsize, 32 // gt.dtype.itemsize)
        if rows >= mult:
            block_rows = min(target_rows, (rows // mult) * mult)
        else:
            block_rows = rows            # block == full array dim (always legal)

        nblocks = (rows + block_rows - 1) // block_rows
        steps_per_core = (nblocks + num_cores - 1) // num_cores
        # First global block index that needs row masking (partial last block
        # and/or redundant clamped blocks when nblocks doesn't split evenly).
        mask_from = nblocks - 1 if rows % block_rows != 0 else nblocks
        need_mask = mask_from < num_cores * steps_per_core

        def in_index_map(c, i):
            # Clamp redundant blocks onto the last real one; masking zeros them.
            return (jnp.minimum(c * steps_per_core + i, nblocks - 1), 0)

        def out_index_map(c, i):
            return (c, 0)

        kernel = _make_kernel(rows, block_rows, steps_per_core, mask_from,
                              need_mask)
        out_struct = jax.ShapeDtypeStruct((num_cores * 8, LANE), jnp.float32)
        bytes_accessed = (n_main * (pred.dtype.itemsize + gt.dtype.itemsize)
                          + 2 * num_cores * 8 * LANE * 4)

        loss_part, npos_part = pl.pallas_call(
            kernel,
            out_shape=(out_struct, out_struct),
            grid_spec=pltpu.PrefetchScalarGridSpec(
                num_scalar_prefetch=0,
                grid=(num_cores, steps_per_core),
                in_specs=[
                    pl.BlockSpec((block_rows, LANE), in_index_map),
                    pl.BlockSpec((block_rows, LANE), in_index_map),
                ],
                out_specs=[
                    pl.BlockSpec((8, LANE), out_index_map),
                    pl.BlockSpec((8, LANE), out_index_map),
                ],
                scratch_shapes=[
                    pltpu.VMEM((8, LANE), jnp.float32),
                    pltpu.VMEM((8, LANE), jnp.float32),
                ],
            ),
            compiler_params=pltpu.CompilerParams(
                dimension_semantics=dim_sem,
                vmem_limit_bytes=vmem_limit,
                allow_input_fusion=[True, True]),
            cost_estimate=pl.CostEstimate(
                flops=14 * n_main,
                transcendentals=2 * n_main,
                bytes_accessed=int(bytes_accessed)),
        )(pred2d, gt2d)

        loss_sum = loss_sum + jnp.sum(loss_part)
        num_pos = num_pos + jnp.sum(npos_part)

    if n_main < n:  # ragged tail (<128 elements): tiny plain-JAX reduction
        pt = pred.reshape(-1)[n_main:].astype(jnp.float32)
        gtt = gt.reshape(-1)[n_main:].astype(jnp.float32)
        pos_mask = gtt == 1.0
        neg_mask = gtt < 1.0
        omp = 1.0 - pt
        w = 1.0 - gtt
        w2 = w * w
        pos_term = jnp.log(pt) * (omp * omp)
        neg_term = jnp.log(omp) * (pt * pt) * (w2 * w2)
        loss_sum = loss_sum + jnp.sum(
            jnp.where(pos_mask, pos_term, jnp.where(neg_mask, neg_term, 0.0)))
        num_pos = num_pos + jnp.sum(pos_mask.astype(jnp.float32))

    # When num_pos == 0 the pos part of loss_sum is identically zero, so
    # -loss_sum / max(num_pos, 1) equals the reference's `-neg_loss` branch.
    return -loss_sum / jnp.maximum(num_pos, 1.0)


def _focal_loss_ref(pred, gt):
    pred = pred.astype(jnp.float32)
    gt = gt.astype(jnp.float32)
    pos_inds = (gt == 1.0).astype(jnp.float32)
    neg_inds = (gt < 1.0).astype(jnp.float32)
    neg_weights = (1.0 - gt) ** 4
    pos_loss = jnp.log(pred) * (1.0 - pred) ** 2 * pos_inds
    neg_loss = jnp.log(1.0 - pred) * pred ** 2 * neg_weights * neg_inds
    num_pos = pos_inds.sum()
    pos_loss = pos_loss.sum()
    neg_loss = neg_loss.sum()
    return jnp.where(num_pos == 0.0, -neg_loss,
                     -(pos_loss + neg_loss) / jnp.maximum(num_pos, 1.0))


if __name__ == "__main__":
    key = jax.random.PRNGKey(0)
    k1, k2, k3, k4 = jax.random.split(key, 4)

    focal_loss_jit = jax.jit(focal_loss)

    # --- primary test: batch x c x h x w = 2 x 4 x 16 x 16, f32 ------------
    B, C, H, W = 2, 4, 16, 16
    pred = jax.random.uniform(k1, (B, C, H, W), jnp.float32,
                              minval=1e-4, maxval=1.0 - 1e-4)
    gt = jax.random.uniform(k2, (B, C, H, W), jnp.float32) ** 4
    gt = gt.at[0, 0, 3, 5].set(1.0)
    gt = gt.at[1, 2, 10, 7].set(1.0)
    gt = gt.at[1, 3, 0, 15].set(1.0)

    loss = focal_loss_jit(pred, gt)
    jax.block_until_ready(loss)
    ref = _focal_loss_ref(pred, gt)
    assert jnp.allclose(loss, ref, rtol=1e-4, atol=1e-4), (loss, ref)

    # --- bf16 inputs go through the kernel in native dtype ------------------
    pred_bf = (pred * 0.9 + 0.05).astype(jnp.bfloat16)
    gt_bf = gt.astype(jnp.bfloat16)
    loss_bf = focal_loss_jit(pred_bf, gt_bf)
    jax.block_until_ready(loss_bf)
    ref_bf = _focal_loss_ref(pred_bf, gt_bf)
    assert jnp.allclose(loss_bf, ref_bf, rtol=1e-4, atol=1e-4), (loss_bf, ref_bf)

    # --- odd row count: exercises multi-step grid, masked boundary block,
    #     and the num_pos == 0 branch -----------------------------------------
    pred_o = jax.random.uniform(k3, (3, 5, 17, 128), jnp.float32,
                                minval=1e-4, maxval=1.0 - 1e-4)
    gt_o = jax.random.uniform(k4, (3, 5, 17, 128), jnp.float32) ** 4
    loss_o = focal_loss_jit(pred_o, gt_o)
    jax.block_until_ready(loss_o)
    ref_o = _focal_loss_ref(pred_o, gt_o)
    assert jnp.allclose(loss_o, ref_o, rtol=1e-4, atol=1e-4), (loss_o, ref_o)

    print("KERNEL_OK")
</pallas_src>

<mosaic_0001>
module attributes {stable_mosaic.version = 11 : i64} {
  func.func @kernel(%arg0: i32, %arg1: i32, %arg2: memref<16x128xf32, #tpu.memory_space<vmem>>, %arg3: memref<16x128xf32, #tpu.memory_space<vmem>>, %arg4: memref<8x128xf32, #tpu.memory_space<vmem>>, %arg5: memref<8x128xf32, #tpu.memory_space<vmem>>, %arg6: memref<8x128xf32, #tpu.memory_space<vmem>>, %arg7: memref<8x128xf32, #tpu.memory_space<vmem>>) attributes {dimension_semantics = [#tpu.dimension_semantics<arbitrary>, #tpu.dimension_semantics<arbitrary>], iteration_bounds = array<i64: 1, 1>, scalar_prefetch = 0 : i64, scratch_operands = 2 : i64, tpu.core_type = #tpu.core_type<tc>, window_params = [{transform_indices = @transform_0, window_bounds = array<i64: 16, 128>}, {transform_indices = @transform_1, window_bounds = array<i64: 16, 128>}, {transform_indices = @transform_2, window_bounds = array<i64: 8, 128>}, {transform_indices = @transform_3, window_bounds = array<i64: 8, 128>}]} {
    %c0_i32 = arith.constant 0 : i32
    %0 = arith.cmpi eq, %arg1, %c0_i32 : i32
    %1 = arith.extui %0 : i1 to i32
    %c0_i32_0 = arith.constant 0 : i32
    %2 = arith.cmpi ne, %1, %c0_i32_0 : i32
    scf.if %2 {
      %cst_20 = arith.constant 0.000000e+00 : f32
      %40 = vector.broadcast %cst_20 : f32 to vector<8x128xf32>
      %c0_21 = arith.constant 0 : index
      %c0_22 = arith.constant 0 : index
      %41 = vector.load %arg6[%c0_21, %c0_22] : memref<8x128xf32, #tpu.memory_space<vmem>>, vector<8x128xf32>
      tpu.vector_store %arg6[%c0_21, %c0_22], %40 {strides = array<i32>} : memref<8x128xf32, #tpu.memory_space<vmem>>, vector<8x128xf32>,
      %cst_23 = arith.constant 0.000000e+00 : f32
      %42 = vector.broadcast %cst_23 : f32 to vector<8x128xf32>
      %c0_24 = arith.constant 0 : index
      %c0_25 = arith.constant 0 : index
      %43 = vector.load %arg7[%c0_24, %c0_25] : memref<8x128xf32, #tpu.memory_space<vmem>>, vector<8x128xf32>
      tpu.vector_store %arg7[%c0_24, %c0_25], %42 {strides = array<i32>} : memref<8x128xf32, #tpu.memory_space<vmem>>, vector<8x128xf32>,
    } else {
    }
    %c0 = arith.constant 0 : index
    %c0_1 = arith.constant 0 : index
    %3 = vector.load %arg2[%c0, %c0_1] : memref<16x128xf32, #tpu.memory_space<vmem>>, vector<16x128xf32>
    %c0_2 = arith.constant 0 : index
    %c0_3 = arith.constant 0 : index
    %4 = vector.load %arg3[%c0_2, %c0_3] : memref<16x128xf32, #tpu.memory_space<vmem>>, vector<16x128xf32>
    %cst = arith.constant 1.000000e+00 : f32
    %5 = vector.broadcast %cst : f32 to vector<16x128xf32>
    %6 = arith.cmpf oeq, %4, %5 : vector<16x128xf32>
    %cst_4 = arith.constant 1.000000e+00 : f32
    %7 = vector.broadcast %cst_4 : f32 to vector<16x128xf32>
    %8 = arith.cmpf olt, %4, %7 : vector<16x128xf32>
    %cst_5 = arith.constant 1.000000e+00 : f32
    %9 = vector.broadcast %cst_5 : f32 to vector<16x128xf32>
    %10 = arith.subf %9, %3 : vector<16x128xf32>
    %cst_6 = arith.constant 1.000000e+00 : f32
    %11 = vector.broadcast %cst_6 : f32 to vector<16x128xf32>
    %12 = arith.subf %11, %4 : vector<16x128xf32>
    %13 = arith.mulf %12, %12 : vector<16x128xf32>
    %14 = math.log %3 : vector<16x128xf32>
    %15 = arith.mulf %10, %10 : vector<16x128xf32>
    %16 = arith.mulf %14, %15 : vector<16x128xf32>
    %17 = math.log %10 : vector<16x128xf32>
    %18 = arith.mulf %3, %3 : vector<16x128xf32>
    %19 = arith.mulf %17, %18 : vector<16x128xf32>
    %20 = arith.mulf %13, %13 : vector<16x128xf32>
    %21 = arith.mulf %19, %20 : vector<16x128xf32>
    %cst_7 = arith.constant 0.000000e+00 : f32
    %22 = vector.broadcast %cst_7 : f32 to vector<16x128xf32>
    %23 = arith.select %8, %21, %22 : vector<16x128xi1>, vector<16x128xf32>
    %24 = arith.select %6, %16, %23 : vector<16x128xi1>, vector<16x128xf32>
    %25 = arith.extui %6 : vector<16x128xi1> to vector<16x128xi32>
    %26 = arith.sitofp %25 : vector<16x128xi32> to vector<16x128xf32>
    %c0_8 = arith.constant 0 : index
    %c0_9 = arith.constant 0 : index
    %27 = vector.load %arg6[%c0_8, %c0_9] : memref<8x128xf32, #tpu.memory_space<vmem>>, vector<8x128xf32>
    %28 = vector.shape_cast %24 : vector<16x128xf32> to vector<2x8x128xf32>
    %cst_10 = arith.constant dense<0.000000e+00> : vector<8x128xf32>
    %29 = vector.multi_reduction <add>, %28, %cst_10 [0] : vector<2x8x128xf32> to vector<8x128xf32>
    %30 = arith.addf %27, %29 : vector<8x128xf32>
    %c0_11 = arith.constant 0 : index
    %c0_12 = arith.constant 0 : index
    %31 = vector.load %arg6[%c0_11, %c0_12] : memref<8x128xf32, #tpu.memory_space<vmem>>, vector<8x128xf32>
    tpu.vector_store %arg6[%c0_11, %c0_12], %30 {strides = array<i32>} : memref<8x128xf32, #tpu.memory_space<vmem>>, vector<8x128xf32>,
    %c0_13 = arith.constant 0 : index
    %c0_14 = arith.constant 0 : index
    %32 = vector.load %arg7[%c0_13, %c0_14] : memref<8x128xf32, #tpu.memory_space<vmem>>, vector<8x128xf32>
    %33 = vector.shape_cast %26 : vector<16x128xf32> to vector<2x8x128xf32>
    %cst_15 = arith.constant dense<0.000000e+00> : vector<8x128xf32>
    %34 = vector.multi_reduction <add>, %33, %cst_15 [0] : vector<2x8x128xf32> to vector<8x128xf32>
    %35 = arith.addf %32, %34 : vector<8x128xf32>
    %c0_16 = arith.constant 0 : index
    %c0_17 = arith.constant 0 : index
    %36 = vector.load %arg7[%c0_16, %c0_17] : memref<8x128xf32, #tpu.memory_space<vmem>>, vector<8x128xf32>
    tpu.vector_store %arg7[%c0_16, %c0_17], %35 {strides = array<i32>} : memref<8x128xf32, #tpu.memory_space<vmem>>, vector<8x128xf32>,
    %c0_i32_18 = arith.constant 0 : i32
    %37 = arith.cmpi eq, %arg1, %c0_i32_18 : i32
    %38 = arith.extui %37 : i1 to i32
    %c0_i32_19 = arith.constant 0 : i32
    %39 = arith.cmpi ne, %38, %c0_i32_19 : i32
    scf.if %39 {
      %c0_20 = arith.constant 0 : index
      %c0_21 = arith.constant 0 : index
      %40 = vector.load %arg6[%c0_20, %c0_21] : memref<8x128xf32, #tpu.memory_space<vmem>>, vector<8x128xf32>
      %c0_22 = arith.constant 0 : index
      %c0_23 = arith.constant 0 : index
      %41 = vector.load %arg4[%c0_22, %c0_23] : memref<8x128xf32, #tpu.memory_space<vmem>>, vector<8x128xf32>
      tpu.vector_store %arg4[%c0_22, %c0_23], %40 {strides = array<i32>} : memref<8x128xf32, #tpu.memory_space<vmem>>, vector<8x128xf32>,
      %c0_24 = arith.constant 0 : index
      %c0_25 = arith.constant 0 : index
      %42 = vector.load %arg7[%c0_24, %c0_25] : memref<8x128xf32, #tpu.memory_space<vmem>>, vector<8x128xf32>
      %c0_26 = arith.constant 0 : index
      %c0_27 = arith.constant 0 : index
      %43 = vector.load %arg5[%c0_26, %c0_27] : memref<8x128xf32, #tpu.memory_space<vmem>>, vector<8x128xf32>
      tpu.vector_store %arg5[%c0_26, %c0_27], %42 {strides = array<i32>} : memref<8x128xf32, #tpu.memory_space<vmem>>, vector<8x128xf32>,
    } else {
    }
    return
  }
  func.func @transform_0(%arg0: i32, %arg1: i32) -> (i32, i32) {
    %c1_i32 = arith.constant 1 : i32
    %0 = arith.muli %arg0, %c1_i32 : i32
    %1 = arith.addi %0, %arg1 : i32
    %c0_i32 = arith.constant 0 : i32
    %2 = arith.minsi %1, %c0_i32 : i32
    %c0_i32_0 = arith.constant 0 : i32
    %c0_i32_1 = arith.constant 0 : i32
    return %2, %c0_i32_0 : i32, i32
  }
  func.func @transform_1(%arg0: i32, %arg1: i32) -> (i32, i32) {
    %c1_i32 = arith.constant 1 : i32
    %0 = arith.muli %arg0, %c1_i32 : i32
    %1 = arith.addi %0, %arg1 : i32
    %c0_i32 = arith.constant 0 : i32
    %2 = arith.minsi %1, %c0_i32 : i32
    %c0_i32_0 = arith.constant 0 : i32
    %c0_i32_1 = arith.constant 0 : i32
    return %2, %c0_i32_0 : i32, i32
  }
  func.func @transform_2(%arg0: i32, %arg1: i32) -> (i32, i32) {
    %c0_i32 = arith.constant 0 : i32
    %c0_i32_0 = arith.constant 0 : i32
    return %arg0, %c0_i32 : i32, i32
  }
  func.func @transform_3(%arg0: i32, %arg1: i32) -> (i32, i32) {
    %c0_i32 = arith.constant 0 : i32
    %c0_i32_0 = arith.constant 0 : i32
    return %arg0, %c0_i32 : i32, i32
  }
}

</mosaic_0001>

<llo_original>
// kernel: focal_loss.1
$region0: #{focal_loss.1}
  #allocation0 [shape = 'u32[]', space=smem, size = 0x4, offset = 0x4, fixed_abs, tag = 'smem constant byte address 0x4 - core index']
  #allocation1 [shape = 'u32[144,128]{1,0:T(1,128)}', space=vmem, size = 0x12000, scoped, tag = 'internal scratch']
  #allocation2 [shape = 'f32[8,128]{1,0:T(8,128)}', space=vmem, size = 0x1000, scoped, tag = 'scratch operand']
  #allocation3 [shape = 'f32[8,128]{1,0:T(8,128)}', space=vmem, size = 0x1000, scoped, tag = 'scratch operand']
  %s0 = inlined_call_operand.vmem [shape: f32[16,128], index: 0, kind: input, shape index: {}]
  %s1 = inlined_call_operand.vmem [shape: f32[16,128], index: 1, kind: input, shape index: {}]
  %s2 = inlined_call_operand.vmem [shape: f32[8,128], index: 2, kind: output, shape index: {0}]
  %s3 = inlined_call_operand.vmem [shape: f32[8,128], index: 3, kind: output, shape index: {1}]
  %4 = xla_tuple %s2, %s3
  %s5 = sld [smem:[#allocation0]]
  $region34: #{focal_loss.1} parent=0
    _
  %s7 = ssub.s32 1, %s5
  %s8 = scalar_select 0, %s7, %s5
  // Predicated region
  $region2: #{focal_loss.1} parent=0 // pred_check
    _
  $region3: #{focal_loss.1} parent=0 // pred_check_branch
    %10 = sbr.rel (0) target = $region5
  $region4: #{focal_loss.1} parent=0 // pred_region
    %s11 = sadd.s32 0, 0
    %p12 = scmp.lt.s32.totalorder %s11, 0
    %s13 = scalar_select %p12, %s11, 0
    %s14 = smul.u32 2, %s13
    %p15 = scmp.lt.s32.totalorder %s14, 1
    %s16 = scalar_select %p15, %s14, 1
    %s17 = smul.addr %s16, 8
    %s18 = scalar_lea.vmem %s0, %s17
    %s19 = sadd.s32 0, 0
    %p20 = scmp.lt.s32.totalorder %s19, 0
    %s21 = scalar_select %p20, %s19, 0
    %s22 = smul.u32 2, %s21
  $region5: #{focal_loss.1} parent=0 // pred_fallthru
    _
  // Predicated region
  $region6: #{focal_loss.1} parent=0 // pred_check
    _
  $region7: #{focal_loss.1} parent=0 // pred_check_branch
    %24 = sbr.rel (0) target = $region9
  $region8: #{focal_loss.1} parent=0 // pred_region
    %s25 = sadd.s32 0, 0
    %p26 = scmp.lt.s32.totalorder %s25, 0
    %s27 = scalar_select %p26, %s25, 0
    %s28 = smul.u32 2, %s27
    %p29 = scmp.lt.s32.totalorder %s28, 1
    %s30 = scalar_select %p29, %s28, 1
    %s31 = smul.addr %s30, 8
    %s32 = scalar_lea.vmem %s1, %s31
    %s33 = sadd.s32 0, 0
    %p34 = scmp.lt.s32.totalorder %s33, 0
    %s35 = scalar_select %p34, %s33, 0
    %s36 = smul.u32 2, %s35
  $region9: #{focal_loss.1} parent=0 // pred_fallthru
    _
  %s37 = sadd.s32 0, 0
  %p38 = scmp.lt.s32.totalorder %s37, 0
  %s39 = scalar_select %p38, %s37, 0
  %s40 = smul.u32 2, %s39
  %p41 = scmp.lt.s32.totalorder %s40, 1
  %s42 = scalar_select %p41, %s40, 1
  %s43 = smul.addr %s42, 8
  %s44 = scalar_lea.vmem %s0, %s43
  %s45 = sadd.s32 0, 0
  %p46 = scmp.lt.s32.totalorder %s45, 0
  %s47 = scalar_select %p46, %s45, 0
  %s48 = smul.u32 2, %s47
  %p49 = scmp.lt.s32.totalorder %s48, 1
  %s50 = scalar_select %p49, %s48, 1
  %s51 = smul.addr %s50, 8
  %s52 = scalar_lea.vmem %s1, %s51
  %s53 = sadd.s32 0, 0
  %p54 = scmp.lt.s32.totalorder %s53, 0
  %s55 = scalar_select %p54, %s53, 0
  %s56 = smul.u32 2, %s55
  %p57 = scmp.lt.s32.totalorder %s56, 1
  %s58 = scalar_select %p57, %s56, 1
  %s59 = smul.addr %s58, 8
  %s60 = scalar_lea.vmem %s0, %s59
  %s61 = sadd.s32 0, 0
  %p62 = scmp.lt.s32.totalorder %s61, 0
  %s63 = scalar_select %p62, %s61, 0
  %s64 = smul.u32 2, %s63
  %s65 = sadd.s32 0, 0
  %p66 = scmp.lt.s32.totalorder %s65, 0
  %s67 = scalar_select %p66, %s65, 0
  %s68 = smul.u32 2, %s67
  %p69 = scmp.lt.s32.totalorder %s68, 1
  %s70 = scalar_select %p69, %s68, 1
  %s71 = smul.addr %s70, 8
  %s72 = scalar_lea.vmem %s1, %s71
  %s73 = sadd.s32 0, 0
  %p74 = scmp.lt.s32.totalorder %s73, 0
  %s75 = scalar_select %p74, %s73, 0
  %s76 = smul.u32 2, %s75
  %p77 = scmp.eq.s32.totalorder 0, 0
  // Predicated region
  $region10: #{focal_loss.1} parent=0 // pred_check
    %p78 = pneg %p77
  $region11: #{focal_loss.1} parent=0 // pred_check_branch
    %80 = sbr.rel (%p78) target = $region13
  $region12: #{focal_loss.1} parent=0 // pred_region
    %81 = vst [vmem:[#allocation2] sm:$0xff] 0.0
    %82 = vst [vmem:[#allocation3] sm:$0xff] 0.0
  $region13: #{focal_loss.1} parent=0 // pred_fallthru
    _
  %v83 = vld [vmem:[%s60] sm:$0xff]
  %v84 = vld [vmem:[%s60 + $0x8] sm:$0xff]
  %v85 = vld [vmem:[%s72] sm:$0xff]
  %v86 = vld [vmem:[%s72 + $0x8] sm:$0xff]
  %vm87 = vcmp.eq.f32.partialorder %v85, 1.0
  %vm88 = vcmp.eq.f32.partialorder %v86, 1.0
  %vm89 = vcmp.lt.f32.partialorder %v85, 1.0
  %vm90 = vcmp.lt.f32.partialorder %v86, 1.0
  %v91 = vsub.f32 1.0, %v83
  %v92 = vsub.f32 1.0, %v84
  %v93 = vsub.f32 1.0, %v85
  %v94 = vsub.f32 1.0, %v86
  %v95 = vmul.f32 %v93, %v93
  %v96 = vmul.f32 %v94, %v94
  %v97 = vlog2.pop %v83
  %v98 = vmul.f32 %v97, 0.6931472
  %v99 = vlog2.pop %v84
  %v100 = vmul.f32 %v99, 0.6931472
  %v101 = vmul.f32 %v91, %v91
  %v102 = vmul.f32 %v92, %v92
  %v103 = vmul.f32 %v98, %v101
  %v104 = vmul.f32 %v100, %v102
  %v105 = vlog2.pop %v91
  %v106 = vmul.f32 %v105, 0.6931472
  %v107 = vlog2.pop %v92
  %v108 = vmul.f32 %v107, 0.6931472
  %v109 = vmul.f32 %v83, %v83
  %v110 = vmul.f32 %v84, %v84
  %v111 = vmul.f32 %v106, %v109
  %v112 = vmul.f32 %v108, %v110
  %v113 = vmul.f32 %v95, %v95
  %v114 = vmul.f32 %v96, %v96
  %v115 = vmul.f32 %v111, %v113
  %v116 = vmul.f32 %v112, %v114
  %v117 = vsel %vm89, %v115, 0.0
  %v118 = vsel %vm90, %v116, 0.0
  %v119 = vsel %vm87, %v103, %v117
  %v120 = vsel %vm88, %v104, %v118
  %v121 = vsel %vm87, 1, 0
  %v122 = vsel %vm88, 1, 0
  %v123 = vcvt.s32.f32 %v121
  %v124 = vcvt.s32.f32 %v122
  %v125 = vld [vmem:[#allocation2] sm:$0xff]
  %v126 = vadd.f32 %v119, %v120
  %v127 = vadd.f32 %v125, %v126
  %128 = vst [vmem:[#allocation2] sm:$0xff] %v127
  %v129 = vld [vmem:[#allocation3] sm:$0xff]
  %v130 = vadd.f32 %v123, %v124
  %v131 = vadd.f32 %v129, %v130
  %132 = vst [vmem:[#allocation3] sm:$0xff] %v131
  // Predicated region
  $region14: #{focal_loss.1} parent=0 // pred_check
    %p133 = pneg %p77
  $region15: #{focal_loss.1} parent=0 // pred_check_branch
    %135 = sbr.rel (%p133) target = $region17
  $region16: #{focal_loss.1} parent=0 // pred_region
    %v136 = vld [vmem:[#allocation2] sm:$0xff]
    %137 = vst [vmem:[%s2] sm:$0xff] %v136
    %v138 = vld [vmem:[#allocation3] sm:$0xff]
    %139 = vst [vmem:[%s3] sm:$0xff] %v138
  $region17: #{focal_loss.1} parent=0 // pred_fallthru
    _
  // Predicated region
  $region18: #{focal_loss.1} parent=0 // pred_check
    _
  $region19: #{focal_loss.1} parent=0 // pred_check_branch
    %141 = sbr.rel (0) target = $region21
  $region20: #{focal_loss.1} parent=0 // pred_region
    _
  $region21: #{focal_loss.1} parent=0 // pred_fallthru
    _
  // Predicated region
  $region22: #{focal_loss.1} parent=0 // pred_check
    _
  $region23: #{focal_loss.1} parent=0 // pred_check_branch
    %143 = sbr.rel (0) target = $region25
  $region24: #{focal_loss.1} parent=0 // pred_region
    _
  $region25: #{focal_loss.1} parent=0 // pred_fallthru
    _
  // Predicated region
  $region26: #{focal_loss.1} parent=0 // pred_check
    _
  $region27: #{focal_loss.1} parent=0 // pred_check_branch
    %145 = sbr.rel (0) target = $region29
  $region28: #{focal_loss.1} parent=0 // pred_region
    _
  $region29: #{focal_loss.1} parent=0 // pred_fallthru
    _
  // Predicated region
  $region30: #{focal_loss.1} parent=0 // pred_check
    _
  $region31: #{focal_loss.1} parent=0 // pred_check_branch
    %147 = sbr.rel (0) target = $region33
  $region32: #{focal_loss.1} parent=0 // pred_region
    _
  $region33: #{focal_loss.1} parent=0 // pred_fallthru
    _

</llo_original>
